<compile_context>
chip_gen: v7x
topology: tpu7x:2x2x1
jax: 0.10.0
libtpu: 0.0.40
codegen_flags: <defaults>
</compile_context>

<pallas_src>
import functools

import jax
import jax.numpy as jnp
from jax import lax
from jax.experimental import pallas as pl
from jax.experimental.pallas import tpu as pltpu


def _apply_act(x, name):
    """Pure-jnp activations (shared by kernel and reference)."""
    if name is None:
        return x
    if name == "relu":
        return jnp.maximum(x, 0.0)
    if name == "leakyrelu":
        return jnp.where(x >= 0, x, 0.2 * x)
    if name == "sigmoid":
        return jax.nn.sigmoid(x)
    if name == "tanh":
        return jnp.tanh(x)
    if name == "elu":
        return jnp.where(x > 0, x, jnp.exp(x) - 1.0)
    if name == "gelu":
        return jax.nn.gelu(x, approximate=False)
    raise ValueError(f"activation {name} is not valid.")


def _band_matrices(w_hwio, W, padding):
    """Fold horizontal taps + horizontal zero-pad + channel mixing into a
    block-Toeplitz matrix per vertical tap.

    w_hwio: (K, K, Cin, Cout) -> returns (K, W*Cin, W*Cout) with
      M[kh, iw*Cin + ci, w*Cout + co] = w[kh, kw, ci, co]   where iw = w+kw-pad
    (entries referencing out-of-range columns are zero = horizontal padding).
    """
    K, _, Cin, Cout = w_hwio.shape
    cols = jnp.arange(W)
    mats = []
    for kh in range(K):
        M = jnp.zeros((W * Cin, W * Cout), w_hwio.dtype)
        for kw in range(K):
            # S[iw, w] = 1  iff  iw == w + kw - padding
            S = (cols[:, None] - cols[None, :] == kw - padding)
            M = M + jnp.kron(S.astype(w_hwio.dtype), w_hwio[kh, kw])
        mats.append(M)
    return jnp.stack(mats)


# ----------------------------------------------------------------------------
# Fused kernel for the K==3, padding==1 case (the instantiated config):
# conv and gate share vertical tap offsets, so their band matrices are
# concatenated along output lanes and each vertical tap is ONE MXU dot.
# ----------------------------------------------------------------------------
def _gated_conv_shared_kernel(x_ref, m_ref, b_ref, out_ref, xp_ref, *,
                              H, W, Cin, Cout, activation):
    # x_ref : (1, H, W*Cin)            lane-dense unpadded input (one image)
    # m_ref : (3, W*Cin, 2*W*Cout)     fused band matrices (conv | gate lanes)
    # b_ref : (1, 2*W*Cout)            lane-tiled biases (conv | gate)
    # xp_ref: (H+2, W*Cin)             VMEM scratch, vertically zero-padded
    WCi = W * Cin
    WCo = W * Cout

    # In-kernel vertical zero pad (full-lane-width row stores).
    xp_ref[0:1, :] = jnp.zeros((1, WCi), jnp.float32)
    xp_ref[H + 1:H + 2, :] = jnp.zeros((1, WCi), jnp.float32)
    xp_ref[1:H + 1, :] = x_ref[0]

    acc = jnp.zeros((H, 2 * WCo), jnp.float32)
    for kh in range(3):                              # 3 MXU dots total
        acc = acc + jnp.dot(xp_ref[kh:kh + H, :], m_ref[kh],
                            preferred_element_type=jnp.float32)
    acc = acc + b_ref[...]                           # (1, 2*WCo) broadcast

    conv = _apply_act(acc[:, :WCo], activation)      # 128-lane aligned slice
    gate = pl.reciprocal(1.0 + jnp.exp(-acc[:, WCo:]), approx=True)  # sigmoid

    out_ref[0] = (conv * gate).astype(out_ref.dtype)  # (H, W*Cout) lane-dense


# ----------------------------------------------------------------------------
# General (K, padding) kernel (stride=1, "same" geometry).  Shares one
# vertically padded scratch (pad = maxp = max(padding, 1)); branch-specific
# vertical offsets; K + 3 MXU dots.
# ----------------------------------------------------------------------------
def _gated_conv_general_kernel(x_ref, mc_ref, mg_ref, b_ref, out_ref, xp_ref,
                               *, K, H, W, Cin, Cout, padding, maxp,
                               activation):
    WCi = W * Cin
    WCo = W * Cout

    xp_ref[0:maxp, :] = jnp.zeros((maxp, WCi), jnp.float32)
    xp_ref[H + maxp:H + 2 * maxp, :] = jnp.zeros((maxp, WCi), jnp.float32)
    xp_ref[maxp:H + maxp, :] = x_ref[0]

    off_c = maxp - padding
    acc_c = jnp.zeros((H, WCo), jnp.float32)
    for kh in range(K):
        acc_c = acc_c + jnp.dot(xp_ref[off_c + kh:off_c + kh + H, :],
                                mc_ref[kh], preferred_element_type=jnp.float32)

    off_g = maxp - 1
    acc_g = jnp.zeros((H, WCo), jnp.float32)
    for kh in range(3):
        acc_g = acc_g + jnp.dot(xp_ref[off_g + kh:off_g + kh + H, :],
                                mg_ref[kh], preferred_element_type=jnp.float32)

    b = b_ref[...]
    conv = _apply_act(acc_c + b[:, :WCo], activation)
    gate = pl.reciprocal(1.0 + jnp.exp(-(acc_g + b[:, WCo:])), approx=True)
    out_ref[0] = (conv * gate).astype(out_ref.dtype)


def gated_conv2d(x_nchw, wc, bc, wg, bg, *, kernel_size, stride, padding,
                 activation=None):
    """Pallas GatedConv2d forward.  x_nchw: (N, Cin, H, W) float32.

    wc: (K, K, Cin, Cout) HWIO conv weight, bc: (Cout,)
    wg: (3, 3, Cin, Cout) HWIO gate weight, bg: (Cout,)
    Returns (N, Cout, H, W).
    """
    # TODO(synk): stride > 1 not supported (gate branch is stride=1; the
    # elementwise product requires matching output geometry).
    assert stride == 1, "kernel implements stride=1 (gate branch is stride=1)"
    K = kernel_size
    x = jnp.transpose(x_nchw, (0, 2, 3, 1))          # NCHW -> NHWC
    N, H, W, Cin = x.shape
    Cout = bc.shape[0]

    Hout = H + 2 * padding - K + 1
    Wout = W + 2 * padding - K + 1
    assert Hout == H and Wout == W, "conv output must match gate output shape"

    maxp = max(padding, 1)                           # one shared padded frame
    WCi = W * Cin
    WCo = W * Cout

    # Lane-dense activation layout (free, contiguous reshape in HBM).
    x2 = x.reshape(N, H, WCi)

    # Lane-tiled biases: b_all[0, w*Cout + co] = bc[co] (conv half) / bg (gate).
    b_all = jnp.concatenate([jnp.tile(bc, W), jnp.tile(bg, W)]).reshape(1, 2 * WCo)

    m_gate = _band_matrices(wg, W, 1)                # (3, W*Cin, W*Cout)
    shared = (K == 3 and padding == 1)

    if shared:
        m_conv = _band_matrices(wc, W, 1)
        # conv lanes [0, W*Cout), gate lanes [W*Cout, 2*W*Cout).
        m_all = jnp.concatenate([m_conv, m_gate], axis=-1)  # (3, WCi, 2*WCo)
        kernel = functools.partial(
            _gated_conv_shared_kernel,
            H=H, W=W, Cin=Cin, Cout=Cout, activation=activation)
        in_specs = [
            pl.BlockSpec((1, H, WCi), lambda n: (n, 0, 0)),
            pl.BlockSpec((3, WCi, 2 * WCo), lambda n: (0, 0, 0)),
            pl.BlockSpec((1, 2 * WCo), lambda n: (0, 0)),
        ]
        args = (x2, m_all, b_all)
        scratch = [pltpu.VMEM((H + 2, WCi), jnp.float32)]
    else:
        m_conv = _band_matrices(wc, W, padding)      # (K, W*Cin, W*Cout)
        kernel = functools.partial(
            _gated_conv_general_kernel,
            K=K, H=H, W=W, Cin=Cin, Cout=Cout, padding=padding, maxp=maxp,
            activation=activation)
        in_specs = [
            pl.BlockSpec((1, H, WCi), lambda n: (n, 0, 0)),
            pl.BlockSpec((K, WCi, WCo), lambda n: (0, 0, 0)),
            pl.BlockSpec((3, WCi, WCo), lambda n: (0, 0, 0)),
            pl.BlockSpec((1, 2 * WCo), lambda n: (0, 0)),
        ]
        args = (x2, m_conv, m_gate, b_all)
        scratch = [pltpu.VMEM((H + 2 * maxp, WCi), jnp.float32)]

    out = pl.pallas_call(
        kernel,
        out_shape=jax.ShapeDtypeStruct((N, H, WCo), jnp.float32),
        grid_spec=pltpu.PrefetchScalarGridSpec(
            num_scalar_prefetch=0,
            grid=(N,),
            in_specs=in_specs,
            # Lane-dense output: last dim W*Cout (=128 here) -> full-lane vst.
            out_specs=pl.BlockSpec((1, H, WCo), lambda n: (n, 0, 0)),
            scratch_shapes=scratch,
        ),
        compiler_params=pltpu.CompilerParams(
            dimension_semantics=("parallel",),       # batch elems independent
        ),
    )(*args)

    out = out.reshape(N, H, W, Cout)                 # un-flatten lanes
    return jnp.transpose(out, (0, 3, 1, 2))          # NHWC -> NCHW


def _reference(x_nchw, wc, bc, wg, bg, *, padding, activation):
    """Pure-JAX reference (lax.conv) for correctness checking."""
    x = jnp.transpose(x_nchw, (0, 2, 3, 1))
    dn = ("NHWC", "HWIO", "NHWC")
    conv = lax.conv_general_dilated(
        x, wc, window_strides=(1, 1),
        padding=[(padding, padding), (padding, padding)],
        dimension_numbers=dn) + bc
    conv = _apply_act(conv, activation)
    gate = lax.conv_general_dilated(
        x, wg, window_strides=(1, 1), padding=[(1, 1), (1, 1)],
        dimension_numbers=dn) + bg
    gate = jax.nn.sigmoid(gate)
    return jnp.transpose(conv * gate, (0, 3, 1, 2))


if __name__ == "__main__":
    # GatedConv2d(in_channels=4, out_channels=8, kernel_size=3, stride=1,
    #             padding=1, norm=None, activation='leakyrelu',
    #             init_type='normal')
    # TODO(synk): norm='bn' (BatchNorm2d) and spectral_norm (sn=True) are not modeled.
    N, Cin, H, W = 2, 4, 16, 16
    Cout, K, stride, padding = 8, 3, 1, 1
    activation = "leakyrelu"

    key = jax.random.PRNGKey(0)
    kx, kwc, kwg = jax.random.split(key, 3)
    x = jax.random.normal(kx, (N, Cin, H, W), dtype=jnp.float32)

    # init_type='normal' -> weights ~ N(0, 0.02), bias = 0 (deterministic here)
    wc = 0.02 * jax.random.normal(kwc, (K, K, Cin, Cout), dtype=jnp.float32)
    bc = jnp.zeros((Cout,), jnp.float32)
    wg = 0.02 * jax.random.normal(kwg, (3, 3, Cin, Cout), dtype=jnp.float32)
    bg = jnp.zeros((Cout,), jnp.float32)

    out = gated_conv2d(x, wc, bc, wg, bg, kernel_size=K, stride=stride,
                       padding=padding, activation=activation)
    out = jax.block_until_ready(out)

    ref = _reference(x, wc, bc, wg, bg, padding=padding, activation=activation)
    assert out.shape == (N, Cout, H, W)
    # Tolerance covers the approximate EUP reciprocal used for the gate sigmoid.
    assert jnp.allclose(out, ref, atol=1e-3, rtol=1e-3), "mismatch vs reference"

    print("KERNEL_OK")
</pallas_src>

<mosaic_0001>
module attributes {stable_mosaic.version = 11 : i64} {
  func.func @_gated_conv_shared_kernel(%arg0: i32, %arg1: memref<1x16x64xf32, #tpu.memory_space<vmem>>, %arg2: memref<3x64x256xf32, #tpu.memory_space<vmem>>, %arg3: memref<1x256xf32, #tpu.memory_space<vmem>>, %arg4: memref<1x16x128xf32, #tpu.memory_space<vmem>>, %arg5: memref<18x64xf32, #tpu.memory_space<vmem>>) attributes {dimension_semantics = [#tpu.dimension_semantics<parallel>], iteration_bounds = array<i64: 2>, scalar_prefetch = 0 : i64, scratch_operands = 1 : i64, tpu.core_type = #tpu.core_type<tc>, window_params = [{transform_indices = @transform_0, window_bounds = array<i64: 1, 16, 64>}, {pipeline_mode = #tpu.pipeline_mode<synchronous>, transform_indices = @transform_1, window_bounds = array<i64: 3, 64, 256>}, {pipeline_mode = #tpu.pipeline_mode<synchronous>, transform_indices = @transform_2, window_bounds = array<i64: 1, 256>}, {transform_indices = @transform_3, window_bounds = array<i64: 1, 16, 128>}]} {
    %cst = arith.constant 0.000000e+00 : f32
    %0 = vector.broadcast %cst : f32 to vector<1x64xf32>
    %c0 = arith.constant 0 : index
    %c0_0 = arith.constant 0 : index
    %1 = vector.load %arg5[%c0, %c0_0] : memref<18x64xf32, #tpu.memory_space<vmem>>, vector<1x64xf32>
    tpu.vector_store %arg5[%c0, %c0_0], %0 {strides = array<i32>} : memref<18x64xf32, #tpu.memory_space<vmem>>, vector<1x64xf32>,
    %cst_1 = arith.constant 0.000000e+00 : f32
    %2 = vector.broadcast %cst_1 : f32 to vector<1x64xf32>
    %c17 = arith.constant 17 : index
    %c0_2 = arith.constant 0 : index
    %3 = vector.load %arg5[%c17, %c0_2] : memref<18x64xf32, #tpu.memory_space<vmem>>, vector<1x64xf32>
    tpu.vector_store %arg5[%c17, %c0_2], %2 {strides = array<i32>} : memref<18x64xf32, #tpu.memory_space<vmem>>, vector<1x64xf32>,
    %c0_3 = arith.constant 0 : index
    %c0_4 = arith.constant 0 : index
    %c0_5 = arith.constant 0 : index
    %4 = vector.load %arg1[%c0_3, %c0_4, %c0_5] : memref<1x16x64xf32, #tpu.memory_space<vmem>>, vector<1x16x64xf32>
    %5 = vector.shape_cast %4 : vector<1x16x64xf32> to vector<16x64xf32>
    %c1 = arith.constant 1 : index
    %c0_6 = arith.constant 0 : index
    %6 = vector.load %arg5[%c1, %c0_6] : memref<18x64xf32, #tpu.memory_space<vmem>>, vector<16x64xf32>
    tpu.vector_store %arg5[%c1, %c0_6], %5 {strides = array<i32>} : memref<18x64xf32, #tpu.memory_space<vmem>>, vector<16x64xf32>,
    %cst_7 = arith.constant 0.000000e+00 : f32
    %7 = vector.broadcast %cst_7 : f32 to vector<16x256xf32>
    %c0_8 = arith.constant 0 : index
    %c0_9 = arith.constant 0 : index
    %8 = vector.load %arg5[%c0_8, %c0_9] : memref<18x64xf32, #tpu.memory_space<vmem>>, vector<16x64xf32>
    %c0_10 = arith.constant 0 : index
    %c0_11 = arith.constant 0 : index
    %c0_12 = arith.constant 0 : index
    %9 = vector.load %arg2[%c0_10, %c0_11, %c0_12] : memref<3x64x256xf32, #tpu.memory_space<vmem>>, vector<1x64x256xf32>
    %10 = vector.shape_cast %9 : vector<1x64x256xf32> to vector<64x256xf32>
    %cst_13 = arith.constant dense<0.000000e+00> : vector<16x256xf32>
    %11 = tpu.matmul %8, %10, %cst_13 {dimension_numbers = #tpu.dot_dimension_numbers<[1], [0], [0], [1], [0, 0, 1, 1], [], []>} : vector<16x64xf32>, vector<64x256xf32>, vector<16x256xf32> -> vector<16x256xf32>
    %12 = arith.addf %7, %11 : vector<16x256xf32>
    %c1_14 = arith.constant 1 : index
    %c0_15 = arith.constant 0 : index
    %13 = vector.load %arg5[%c1_14, %c0_15] : memref<18x64xf32, #tpu.memory_space<vmem>>, vector<16x64xf32>
    %c1_16 = arith.constant 1 : index
    %c0_17 = arith.constant 0 : index
    %c0_18 = arith.constant 0 : index
    %14 = vector.load %arg2[%c1_16, %c0_17, %c0_18] : memref<3x64x256xf32, #tpu.memory_space<vmem>>, vector<1x64x256xf32>
    %15 = vector.shape_cast %14 : vector<1x64x256xf32> to vector<64x256xf32>
    %cst_19 = arith.constant dense<0.000000e+00> : vector<16x256xf32>
    %16 = tpu.matmul %13, %15, %cst_19 {dimension_numbers = #tpu.dot_dimension_numbers<[1], [0], [0], [1], [0, 0, 1, 1], [], []>} : vector<16x64xf32>, vector<64x256xf32>, vector<16x256xf32> -> vector<16x256xf32>
    %17 = arith.addf %12, %16 : vector<16x256xf32>
    %c2 = arith.constant 2 : index
    %c0_20 = arith.constant 0 : index
    %18 = vector.load %arg5[%c2, %c0_20] : memref<18x64xf32, #tpu.memory_space<vmem>>, vector<16x64xf32>
    %c2_21 = arith.constant 2 : index
    %c0_22 = arith.constant 0 : index
    %c0_23 = arith.constant 0 : index
    %19 = vector.load %arg2[%c2_21, %c0_22, %c0_23] : memref<3x64x256xf32, #tpu.memory_space<vmem>>, vector<1x64x256xf32>
    %20 = vector.shape_cast %19 : vector<1x64x256xf32> to vector<64x256xf32>
    %cst_24 = arith.constant dense<0.000000e+00> : vector<16x256xf32>
    %21 = tpu.matmul %18, %20, %cst_24 {dimension_numbers = #tpu.dot_dimension_numbers<[1], [0], [0], [1], [0, 0, 1, 1], [], []>} : vector<16x64xf32>, vector<64x256xf32>, vector<16x256xf32> -> vector<16x256xf32>
    %22 = arith.addf %17, %21 : vector<16x256xf32>
    %c0_25 = arith.constant 0 : index
    %c0_26 = arith.constant 0 : index
    %23 = vector.load %arg3[%c0_25, %c0_26] : memref<1x256xf32, #tpu.memory_space<vmem>>, vector<1x256xf32>
    %24 = vector.broadcast %23 : vector<1x256xf32> to vector<16x256xf32>
    %25 = arith.addf %22, %24 : vector<16x256xf32>
    %26 = vector.extract_strided_slice %25 {offsets = [0, 0], sizes = [16, 128], strides = [1, 1]} : vector<16x256xf32> to vector<16x128xf32>
    %cst_27 = arith.constant 0.000000e+00 : f32
    %27 = vector.broadcast %cst_27 : f32 to vector<16x128xf32>
    %28 = arith.cmpf oge, %26, %27 : vector<16x128xf32>
    %cst_28 = arith.constant 2.000000e-01 : f32
    %29 = vector.broadcast %cst_28 : f32 to vector<16x128xf32>
    %30 = arith.mulf %29, %26 : vector<16x128xf32>
    %31 = arith.select %28, %26, %30 : vector<16x128xi1>, vector<16x128xf32>
    %32 = vector.extract_strided_slice %25 {offsets = [0, 128], sizes = [16, 128], strides = [1, 1]} : vector<16x256xf32> to vector<16x128xf32>
    %cst_29 = arith.constant 0.000000e+00 : f32
    %33 = vector.broadcast %cst_29 : f32 to vector<16x128xf32>
    %34 = arith.subf %33, %32 : vector<16x128xf32>
    %35 = math.exp %34 : vector<16x128xf32>
    %cst_30 = arith.constant 1.000000e+00 : f32
    %36 = vector.broadcast %cst_30 : f32 to vector<16x128xf32>
    %37 = arith.addf %36, %35 : vector<16x128xf32>
    %38 = tpu.reciprocal %37 {approx = true} : vector<16x128xf32> -> vector<16x128xf32>
    %39 = arith.mulf %31, %38 : vector<16x128xf32>
    %c0_31 = arith.constant 0 : index
    %c0_32 = arith.constant 0 : index
    %c0_33 = arith.constant 0 : index
    %40 = vector.load %arg4[%c0_31, %c0_32, %c0_33] : memref<1x16x128xf32, #tpu.memory_space<vmem>>, vector<1x16x128xf32>
    %41 = vector.shape_cast %40 : vector<1x16x128xf32> to vector<16x128xf32>
    %42 = vector.shape_cast %39 : vector<16x128xf32> to vector<1x16x128xf32>
    tpu.vector_store %arg4[%c0_31, %c0_32, %c0_33], %42 {strides = array<i32>} : memref<1x16x128xf32, #tpu.memory_space<vmem>>, vector<1x16x128xf32>,
    return
  }
  func.func @transform_0(%arg0: i32) -> (i32, i32, i32) {
    %c0_i32 = arith.constant 0 : i32
    %c0_i32_0 = arith.constant 0 : i32
    %c0_i32_1 = arith.constant 0 : i32
    return %arg0, %c0_i32, %c0_i32_0 : i32, i32, i32
  }
  func.func @transform_1(%arg0: i32) -> (i32, i32, i32) {
    %c0_i32 = arith.constant 0 : i32
    %c0_i32_0 = arith.constant 0 : i32
    %c0_i32_1 = arith.constant 0 : i32
    %c0_i32_2 = arith.constant 0 : i32
    return %c0_i32, %c0_i32_0, %c0_i32_1 : i32, i32, i32
  }
  func.func @transform_2(%arg0: i32) -> (i32, i32) {
    %c0_i32 = arith.constant 0 : i32
    %c0_i32_0 = arith.constant 0 : i32
    %c0_i32_1 = arith.constant 0 : i32
    return %c0_i32, %c0_i32_0 : i32, i32
  }
  func.func @transform_3(%arg0: i32) -> (i32, i32, i32) {
    %c0_i32 = arith.constant 0 : i32
    %c0_i32_0 = arith.constant 0 : i32
    %c0_i32_1 = arith.constant 0 : i32
    return %arg0, %c0_i32, %c0_i32_0 : i32, i32, i32
  }
}

</mosaic_0001>

<llo_original>
// kernel: tpu_custom_call.1
$region0: #{tpu_custom_call.1}
  #allocation0 [shape = 'u32[]', space=smem, size = 0x4, offset = 0x4, fixed_abs, tag = 'smem constant byte address 0x4 - core index']
  #allocation1 [shape = 'u32[144,128]{1,0:T(1,128)}', space=vmem, size = 0x12000, scoped, tag = 'internal scratch']
  #allocation2 [shape = 'f32[18,64]{1,0:T(8,128)}', space=vmem, size = 0x3000, scoped, tag = 'scratch operand']
  %s0 = inlined_call_operand.hbm [shape: f32[2,16,64], index: 0, kind: input, shape index: {}]
  %s1 = inlined_call_operand.hbm [shape: f32[3,64,256], index: 1, kind: input, shape index: {}]
  %s2 = inlined_call_operand.vmem [shape: f32[1,256], index: 2, kind: input, shape index: {}]
  %s3 = inlined_call_operand.hbm [shape: f32[2,16,128], index: 3, kind: output, shape index: {}]
  %s4 = sld [smem:[#allocation0]]
  $region53: #{tpu_custom_call.1} parent=0
    _
  %s6 = ssub.s32 1, %s4
  %s7 = scalar_select 0, %s6, %s4
  $region1: #{tpu_custom_call.1} parent=0
    #allocation3 [shape = 'u8[16384]{0}', space=vmem, size = 0x4000, scoped, tag = 'input window, operand 0']
    #allocation4 [shape = 's32[2]{0}', space=sflag, size = 0x8, scoped, tag = 'scoped memory for tpu_custom_call.1']
    #allocation5 [shape = 's32[2]{0}', space=sflag, size = 0x8, scoped, tag = 'scoped memory for tpu_custom_call.1']
    #allocation6 [shape = 'u8[196608]{0}', space=vmem, size = 0x30000, scoped, tag = 'input window, operand 1, single buffered']
    #allocation7 [shape = 's32[1]{0}', space=sflag, size = 0x4, scoped, tag = 'scoped memory for tpu_custom_call.1']
    #allocation8 [shape = 'u8[16384]{0}', space=vmem, size = 0x4000, scoped, tag = 'output window, operand 0']
    %8 = vsyncpa [#allocation4], 0
    %s9 = scalar_lea.sflag [#allocation4], 1
    %10 = vsyncpa %s9, 0
    %11 = vsyncpa [#allocation7], 0
    %12 = vsyncpa [#allocation5], 0
    %s13 = scalar_lea.sflag [#allocation5], 1
    %14 = vsyncpa %s13, 0
    loop: start=0, step=1, limit=4
    $region2: #{tpu_custom_call.1} parent=1 // loop_pre_header
      _
    $region3: #{tpu_custom_call.1} parent=1 // loop_header
      %s16 = sphi 0, %s20
      %p17 = scmp.ge.s32.totalorder %s16, 4
      %s26 = sphi 0, %s28
      %s29 = sphi 0, %s26
      %s30 = sphi 0, %s29
      %s46 = sphi 0, %s30
      %s50 = sphi 0, %s50
      %s52 = sphi 0, %s50
      %s53 = sphi 0, %s52
      %s67 = sphi 0, %s53
      %s71 = sphi 0, %s71
      %s73 = sphi 0, %s71
      %s74 = sphi 0, %s73
      %s88 = sphi 0, %s74
      %s94 = sphi 0, %s96
      %s97 = sphi 0, %s94
      %s98 = sphi 0, %s97
      %s114 = sphi 0, %s98
    $region4: #{tpu_custom_call.1} parent=1 // loop_header_branch
      %19 = sbr.rel (%p17) target = $region8
    $region5: #{tpu_custom_call.1} parent=1 // loop_body
      %s21 = ssub.s32 %s16, 1
      %s22 = ssub.s32 %s16, 2
      %s23 = sadd.s32 %s16, 1
      %s24 = ssub.s32 %s16, %s23
      %p25 = scmp.eq.s32.totalorder %s24, 0
      %s27 = sadd.s32 %s26, 1
      %s28 = scalar_select %p25, %s26, %s27
      %p31 = pneg %p25
      %p32 = scmp.eq.s32.totalorder %s16, 1
      %p33 = por %p31, %p32
      %p34 = scmp.ne.s32.totalorder %s26, %s29
      %p35 = scmp.eq.s32.totalorder %s16, 0
      %p36 = por %p34, %p35
      %p37 = scmp.ne.s32.totalorder %s26, %s29
      %p38 = scmp.eq.s32.totalorder %s21, 1
      %p39 = por %p37, %p38
      %p40 = scmp.ne.s32.totalorder %s29, %s30
      %p41 = scmp.eq.s32.totalorder %s21, 0
      %p42 = por %p40, %p41
      %p43 = scmp.ne.s32.totalorder %s29, %s30
      %p44 = scmp.eq.s32.totalorder %s22, 1
      %p45 = por %p43, %p44
      %p47 = scmp.ne.s32.totalorder %s30, %s46
      %p48 = scmp.eq.s32.totalorder %s22, 0
      %p49 = por %p47, %p48
      %s51 = sadd.s32 %s50, 1
      %p54 = scmp.eq.s32.totalorder %s16, 1
      %p55 = scmp.ne.s32.totalorder %s50, %s52
      %p56 = scmp.eq.s32.totalorder %s16, 0
      %p57 = por %p55, %p56
      %p58 = scmp.ne.s32.totalorder %s50, %s52
      %p59 = scmp.eq.s32.totalorder %s21, 1
      %p60 = por %p58, %p59
      %p61 = scmp.ne.s32.totalorder %s52, %s53
      %p62 = scmp.eq.s32.totalorder %s21, 0
      %p63 = por %p61, %p62
      %p64 = scmp.ne.s32.totalorder %s52, %s53
      %p65 = scmp.eq.s32.totalorder %s22, 1
      %p66 = por %p64, %p65
      %p68 = scmp.ne.s32.totalorder %s53, %s67
      %p69 = scmp.eq.s32.totalorder %s22, 0
      %p70 = por %p68, %p69
      %s72 = sadd.s32 %s71, 1
      %p75 = scmp.eq.s32.totalorder %s16, 1
      %p76 = scmp.ne.s32.totalorder %s71, %s73
      %p77 = scmp.eq.s32.totalorder %s16, 0
      %p78 = por %p76, %p77
      %p79 = scmp.ne.s32.totalorder %s71, %s73
      %p80 = scmp.eq.s32.totalorder %s21, 1
      %p81 = por %p79, %p80
      %p82 = scmp.ne.s32.totalorder %s73, %s74
      %p83 = scmp.eq.s32.totalorder %s21, 0
      %p84 = por %p82, %p83
      %p85 = scmp.ne.s32.totalorder %s73, %s74
      %p86 = scmp.eq.s32.totalorder %s22, 1
      %p87 = por %p85, %p86
      %p89 = scmp.ne.s32.totalorder %s74, %s88
      %p90 = scmp.eq.s32.totalorder %s22, 0
      %p91 = por %p89, %p90
      %s92 = ssub.s32 %s16, %s23
      %p93 = scmp.eq.s32.totalorder %s92, 0
      %s95 = sadd.s32 %s94, 1
      %s96 = scalar_select %p93, %s94, %s95
      %p99 = pneg %p93
      %p100 = scmp.eq.s32.totalorder %s16, 1
      %p101 = por %p99, %p100
      %p102 = scmp.ne.s32.totalorder %s94, %s97
      %p103 = scmp.eq.s32.totalorder %s16, 0
      %p104 = por %p102, %p103
      %p105 = scmp.ne.s32.totalorder %s94, %s97
      %p106 = scmp.eq.s32.totalorder %s21, 1
      %p107 = por %p105, %p106
      %p108 = scmp.ne.s32.totalorder %s97, %s98
      %p109 = scmp.eq.s32.totalorder %s21, 0
      %p110 = por %p108, %p109
      %p111 = scmp.ne.s32.totalorder %s97, %s98
      %p112 = scmp.eq.s32.totalorder %s22, 1
      %p113 = por %p111, %p112
      %p115 = scmp.ne.s32.totalorder %s98, %s114
      %p116 = scmp.eq.s32.totalorder %s22, 0
      %p117 = por %p115, %p116
      %p118 = scmp.le.s32.totalorder 1, %s16
      %p119 = scmp.lt.s32.totalorder %s16, 3
      %p120 = pnand %p118, %p119
      %p121 = pneg %p120
      // Predicated region
      $region9: #{tpu_custom_call.1} parent=5 // pred_check
        _
      $region10: #{tpu_custom_call.1} parent=5 // pred_check_branch
        %123 = sbr.rel (%p120) target = $region12
      $region11: #{tpu_custom_call.1} parent=5 // pred_region
        %s124 = ssub.s32 %s16, 1
        // Predicated region
        $region13: #{tpu_custom_call.1} parent=11 // pred_check
          %p125 = pneg %p63
        $region14: #{tpu_custom_call.1} parent=11 // pred_check_branch
          %127 = sbr.rel (%p125) target = $region16
        $region15: #{tpu_custom_call.1} parent=11 // pred_region
          %s129 = ssub.s32 6144, 6144
          %130 = vsyncadd [#allocation7], %s129
          %s131 = sshll.u32 [#allocation6], 4
          %s132 = int_to_ptr.vmem [resolvable:$true] %s131
          %137 = dma.hbm_to_vmem [thread:$0]  %s1, 6144, %s132, [#allocation7], 256, 256, 16
        $region16: #{tpu_custom_call.1} parent=11 // pred_fallthru
          _
        // Predicated region
        $region17: #{tpu_custom_call.1} parent=11 // pred_check
          %p138 = pneg %p84
        $region18: #{tpu_custom_call.1} parent=11 // pred_check_branch
          %140 = sbr.rel (%p138) target = $region20
        $region19: #{tpu_custom_call.1} parent=11 // pred_region
          _
        $region20: #{tpu_custom_call.1} parent=11 // pred_fallthru
          _
      $region12: #{tpu_custom_call.1} parent=5 // pred_fallthru
        _
      %p141 = scmp.lt.s32.totalorder %s16, 2
      // Predicated region
      $region21: #{tpu_custom_call.1} parent=5 // pred_check
        %p142 = pneg %p141
      $region22: #{tpu_custom_call.1} parent=5 // pred_check_branch
        %144 = sbr.rel (%p142) target = $region24
      $region23: #{tpu_custom_call.1} parent=5 // pred_region
        // Predicated region
        $region25: #{tpu_custom_call.1} parent=23 // pred_check
          %p145 = pneg %p36
        $region26: #{tpu_custom_call.1} parent=23 // pred_check_branch
          %147 = sbr.rel (%p145) target = $region28
        $region27: #{tpu_custom_call.1} parent=23 // pred_region
          %s148 = sand.u32 %s26, 1
          %s149 = scalar_lea.sflag [#allocation4], %s148
          %s150 = sand.u32 %s26, 1
          %s151 = smul.addr %s150, 16
          %s152 = scalar_lea.vmem [#allocation3], %s151
          %s154 = ssub.s32 256, 256
          %155 = vsyncadd %s149, %s154
          %s156 = smul.addr %s16, 2
          %s157 = smul.addr %s156, 128
          %s158 = scalar_lea.hbm %s0, %s157
          %s159 = sshll.u32 %s152, 4
          %s160 = int_to_ptr.vmem [resolvable:$true] %s159
          %165 = dma.hbm_to_vmem [thread:$0]  %s158, 256, %s160, %s149, 128, 128, 8
        $region28: #{tpu_custom_call.1} parent=23 // pred_fallthru
          _
      $region24: #{tpu_custom_call.1} parent=5 // pred_fallthru
        _
      %p166 = scmp.le.s32.totalorder 1, %s16
      %p167 = scmp.lt.s32.totalorder %s16, 3
      %p168 = pnand %p166, %p167
      %p169 = pneg %p168
      // Predicated region
      $region29: #{tpu_custom_call.1} parent=5 // pred_check
        _
      $region30: #{tpu_custom_call.1} parent=5 // pred_check_branch
        %171 = sbr.rel (%p168) target = $region32
      $region31: #{tpu_custom_call.1} parent=5 // pred_region
        %s172 = ssub.s32 %s16, 1
        %s173 = sand.u32 %s29, 1
        %s174 = scalar_lea.sflag [#allocation4], %s173
        %s175 = sand.u32 %s29, 1
        %s176 = smul.addr %s175, 16
        %s177 = scalar_lea.vmem [#allocation3], %s176
        // Predicated region
        $region33: #{tpu_custom_call.1} parent=31 // pred_check
          %p178 = pneg %p42
        $region34: #{tpu_custom_call.1} parent=31 // pred_check_branch
          %180 = sbr.rel (%p178) target = $region36
        $region35: #{tpu_custom_call.1} parent=31 // pred_region
          %181 = dma.done %s174, 256
        $region36: #{tpu_custom_call.1} parent=31 // pred_fallthru
          _
        // Predicated region
        $region37: #{tpu_custom_call.1} parent=31 // pred_check
          %p182 = pneg %p63
        $region38: #{tpu_custom_call.1} parent=31 // pred_check_branch
          %184 = sbr.rel (%p182) target = $region40
        $region39: #{tpu_custom_call.1} parent=31 // pred_region
          %185 = dma.done [#allocation7], 6144
        $region40: #{tpu_custom_call.1} parent=31 // pred_fallthru
          _
        %s186 = sand.u32 %s29, 1
        %s187 = scalar_lea.sflag [#allocation4], %s186
        %s188 = sand.u32 %s29, 1
        %s189 = smul.addr %s188, 16
        %s190 = scalar_lea.vmem [#allocation3], %s189
        %p191 = pneg %p42
        %p192 = pneg %p39
        %p193 = pneg %p63
        %p194 = pneg %p60
        %p195 = pneg %p84
        %p196 = pneg %p81
        %p197 = pneg %p110
        %p198 = pneg %p107
        %s199 = sand.u32 %s97, 1
        %s200 = scalar_lea.sflag [#allocation5], %s199
        %s201 = sand.u32 %s97, 1
        %s202 = smul.addr %s201, 16
        %s203 = scalar_lea.vmem [#allocation8], %s202
        %vm204 = vcmask 516096
        %205 = vst.msk [vmem:[#allocation2] sm:$0x1] %vm204, 0.0
        %206 = vst.msk [vmem:[#allocation2 + $0x11] sm:$0x1] %vm204, 0.0
        %v207 = vld [vmem:[%s177] sm:$0xff]
        %v208 = vld [vmem:[%s177 + $0x8] sm:$0xff]
        %vm209 = vcmask 523264
        %210 = vst.msk [vmem:[#allocation2 + $0x1] sm:$0xff] %vm209, %v207
        %211 = vst.msk [vmem:[#allocation2 + $0x9] sm:$0xff] %vm209, %v208
        %v212 = vld [vmem:[#allocation2] sm:$0xff]
        %v213 = vld [vmem:[#allocation2 + $0x8] sm:$0xff]
        %v214 = vld [vmem:[#allocation6] sm:$0xff]
        %v215 = vld [vmem:[#allocation6 + $0x8] sm:$0xff]
        %v216 = vld [vmem:[#allocation6 + $0x10] sm:$0xff]
        %v217 = vld [vmem:[#allocation6 + $0x18] sm:$0xff]
        %v218 = vld [vmem:[#allocation6 + $0x20] sm:$0xff]
        %v219 = vld [vmem:[#allocation6 + $0x28] sm:$0xff]
        %v220 = vld [vmem:[#allocation6 + $0x30] sm:$0xff]
        %v221 = vld [vmem:[#allocation6 + $0x38] sm:$0xff]
        %v222 = vld [vmem:[#allocation6 + $0x40] sm:$0xff]
        %v223 = vld [vmem:[#allocation6 + $0x48] sm:$0xff]
        %v224 = vld [vmem:[#allocation6 + $0x50] sm:$0xff]
        %v225 = vld [vmem:[#allocation6 + $0x58] sm:$0xff]
        %v226 = vld [vmem:[#allocation6 + $0x60] sm:$0xff]
        %v227 = vld [vmem:[#allocation6 + $0x68] sm:$0xff]
        %v228 = vld [vmem:[#allocation6 + $0x70] sm:$0xff]
        %v229 = vld [vmem:[#allocation6 + $0x78] sm:$0xff]
        %v230 = vld [vmem:[#allocation2 + $0x1] sm:$0xff]
        %v231 = vld [vmem:[#allocation2 + $0x9] sm:$0xff]
        %s232 = scalar_lea.vmem [#allocation6], 128
        %v233 = vld [vmem:[%s232] sm:$0xff]
        %v234 = vld [vmem:[%s232 + $0x8] sm:$0xff]
        %v235 = vld [vmem:[%s232 + $0x10] sm:$0xff]
        %v236 = vld [vmem:[%s232 + $0x18] sm:$0xff]
        %v237 = vld [vmem:[%s232 + $0x20] sm:$0xff]
        %v238 = vld [vmem:[%s232 + $0x28] sm:$0xff]
        %v239 = vld [vmem:[%s232 + $0x30] sm:$0xff]
        %v240 = vld [vmem:[%s232 + $0x38] sm:$0xff]
        %v241 = vld [vmem:[%s232 + $0x40] sm:$0xff]
        %v242 = vld [vmem:[%s232 + $0x48] sm:$0xff]
        %v243 = vld [vmem:[%s232 + $0x50] sm:$0xff]
        %v244 = vld [vmem:[%s232 + $0x58] sm:$0xff]
        %v245 = vld [vmem:[%s232 + $0x60] sm:$0xff]
        %v246 = vld [vmem:[%s232 + $0x68] sm:$0xff]
        %v247 = vld [vmem:[%s232 + $0x70] sm:$0xff]
        %v248 = vld [vmem:[%s232 + $0x78] sm:$0xff]
        %v250 = vsel %vm209, %v230, 0
        %v253 = vsel %vm209, %v231, 0
        %255 = vmatprep.subr.mxu0 %v234
        %256 = vmatpush1.msra.mxu0 %v233
        %257 = vmatprep.subr.mxu0 %v236
        %258 = vmatpush1.msra.mxu0 %v235
        %259 = vmatprep.subr.mxu0 %v238
        %260 = vmatpush1.msra.mxu0 %v237
        %261 = vmatprep.subr.mxu0 %v240
        %262 = vmatpush1.msra.mxu0 %v239
        %263 = vmatprep.subr.mxu0 %v242
        %264 = vmatpush1.msra.mxu0 %v241
        %265 = vmatprep.subr.mxu0 %v244
        %266 = vmatpush1.msra.mxu0 %v243
        %267 = vmatprep.subr.mxu0 %v246
        %268 = vmatpush1.msra.mxu0 %v245
        %269 = vmatprep.subr.mxu0 %v248
        %270 = vmatpush1.msra.mxu0 %v247
        %271 = vmatprep.subr.mxu0 0.0
        %272 = vmatpush1.msra.mxu0 0.0
        %273 = vmatprep.subr.mxu0 0.0
        %274 = vmatpush1.msra.mxu0 0.0
        %275 = vmatprep.subr.mxu0 0.0
        %276 = vmatpush1.msra.mxu0 0.0
        %277 = vmatprep.subr.mxu0 0.0
        %278 = vmatpush1.msra.mxu0 0.0
        %279 = vmatprep.subr.mxu0 0.0
        %280 = vmatpush1.msra.mxu0 0.0
        %281 = vmatprep.subr.mxu0 0.0
        %282 = vmatpush1.msra.mxu0 0.0
        %283 = vmatprep.subr.mxu0 0.0
        %284 = vmatpush1.msra.mxu0 0.0
        %285 = vmatprep.subr.mxu0 0.0
        %286 = vmatpush1.msra.mxu0 0.0
        %287 = vmatprep.subr.mxu0 0.0
        %288 = vmatpush1.msra.mxu0 0.0
        %289 = vmatprep.subr.mxu0 0.0
        %290 = vmatpush1.msra.mxu0 0.0
        %291 = vmatprep.subr.mxu0 0.0
        %292 = vmatpush1.msra.mxu0 0.0
        %293 = vmatprep.subr.mxu0 0.0
        %294 = vmatpush1.msra.mxu0 0.0
        %295 = vmatprep.subr.mxu0 0.0
        %296 = vmatpush1.msra.mxu0 0.0
        %297 = vmatprep.subr.mxu0 0.0
        %298 = vmatpush1.msra.mxu0 0.0
        %299 = vmatprep.subr.mxu0 0.0
        %300 = vmatpush1.msra.mxu0 0.0
        %301 = vmatprep.subr.mxu0 0.0
        %302 = vmatpush1.msra.mxu0 0.0
        %303 = vmatprep.subr.mxu0 0.0
        %304 = vmatpush1.msra.mxu0 0.0
        %305 = vmatprep.subr.mxu0 0.0
        %306 = vmatpush1.msra.mxu0 0.0
        %307 = vmatprep.subr.mxu0 0.0
        %308 = vmatpush1.msra.mxu0 0.0
        %309 = vmatprep.subr.mxu0 0.0
        %310 = vmatpush1.msra.mxu0 0.0
        %311 = vmatprep.subr.mxu0 0.0
        %312 = vmatpush1.msra.mxu0 0.0
        %313 = vmatprep.subr.mxu0 0.0
        %314 = vmatpush1.msra.mxu0 0.0
        %315 = vmatprep.subr.mxu0 0.0
        %316 = vmatpush1.msra.mxu0 0.0
        %317 = vmatprep.subr.mxu0 0.0
        %318 = vmatpush1.msra.mxu0 0.0
        %319 = vmatprep.mubr.f32.mxu0 0.0
        %320 = vmatmul.mubr.f32.gmra.mrb[0].mxu0 %v250
        %v321 = vpop.f32.mrb[0].mxu0
        %v322 = vadd.f32 0.0, %v321
        %v323 = vpop.f32.mrb[0].mxu0
        %v324 = vadd.f32 0.0, %v323
        %325 = vmatprep.mubr.f32.mxu0 0.0
        %326 = vmatmul.mubr.f32.gmra.mrb[0].mxu0 %v253
        %v327 = vpop.f32.mrb[0].mxu0
        %v328 = vadd.f32 0.0, %v327
        %v329 = vpop.f32.mrb[0].mxu0
        %v330 = vadd.f32 0.0, %v329
        %331 = vdwg.mxu0
        %v333 = vsel %vm209, %v212, 0
        %v336 = vsel %vm209, %v213, 0
        %338 = vmatprep.subr.mxu0 %v215
        %339 = vmatpush1.msra.mxu0 %v214
        %340 = vmatprep.subr.mxu0 %v217
        %341 = vmatpush1.msra.mxu0 %v216
        %342 = vmatprep.subr.mxu0 %v219
        %343 = vmatpush1.msra.mxu0 %v218
        %344 = vmatprep.subr.mxu0 %v221
        %345 = vmatpush1.msra.mxu0 %v220
        %346 = vmatprep.subr.mxu0 %v223
        %347 = vmatpush1.msra.mxu0 %v222
        %348 = vmatprep.subr.mxu0 %v225
        %349 = vmatpush1.msra.mxu0 %v224
        %350 = vmatprep.subr.mxu0 %v227
        %351 = vmatpush1.msra.mxu0 %v226
        %352 = vmatprep.subr.mxu0 %v229
        %353 = vmatpush1.msra.mxu0 %v228
        %354 = vmatprep.subr.mxu0 0.0
        %355 = vmatpush1.msra.mxu0 0.0
        %356 = vmatprep.subr.mxu0 0.0
        %357 = vmatpush1.msra.mxu0 0.0
        %358 = vmatprep.subr.mxu0 0.0
        %359 = vmatpush1.msra.mxu0 0.0
        %360 = vmatprep.subr.mxu0 0.0
        %361 = vmatpush1.msra.mxu0 0.0
        %362 = vmatprep.subr.mxu0 0.0
        %363 = vmatpush1.msra.mxu0 0.0
        %364 = vmatprep.subr.mxu0 0.0
        %365 = vmatpush1.msra.mxu0 0.0
        %366 = vmatprep.subr.mxu0 0.0
        %367 = vmatpush1.msra.mxu0 0.0
        %368 = vmatprep.subr.mxu0 0.0
        %369 = vmatpush1.msra.mxu0 0.0
        %370 = vmatprep.subr.mxu0 0.0
        %371 = vmatpush1.msra.mxu0 0.0
        %372 = vmatprep.subr.mxu0 0.0
        %373 = vmatpush1.msra.mxu0 0.0
        %374 = vmatprep.subr.mxu0 0.0
        %375 = vmatpush1.msra.mxu0 0.0
        %376 = vmatprep.subr.mxu0 0.0
        %377 = vmatpush1.msra.mxu0 0.0
        %378 = vmatprep.subr.mxu0 0.0
        %379 = vmatpush1.msra.mxu0 0.0
        %380 = vmatprep.subr.mxu0 0.0
        %381 = vmatpush1.msra.mxu0 0.0
        %382 = vmatprep.subr.mxu0 0.0
        %383 = vmatpush1.msra.mxu0 0.0
        %384 = vmatprep.subr.mxu0 0.0
        %385 = vmatpush1.msra.mxu0 0.0
        %386 = vmatprep.subr.mxu0 0.0
        %387 = vmatpush1.msra.mxu0 0.0
        %388 = vmatprep.subr.mxu0 0.0
        %389 = vmatpush1.msra.mxu0 0.0
        %390 = vmatprep.subr.mxu0 0.0
        %391 = vmatpush1.msra.mxu0 0.0
        %392 = vmatprep.subr.mxu0 0.0
        %393 = vmatpush1.msra.mxu0 0.0
        %394 = vmatprep.subr.mxu0 0.0
        %395 = vmatpush1.msra.mxu0 0.0
        %396 = vmatprep.subr.mxu0 0.0
        %397 = vmatpush1.msra.mxu0 0.0
        %398 = vmatprep.subr.mxu0 0.0
        %399 = vmatpush1.msra.mxu0 0.0
        %400 = vmatprep.subr.mxu0 0.0
        %401 = vmatpush1.msra.mxu0 0.0
        %402 = vmatprep.mubr.f32.mxu0 0.0
        %403 = vmatmul.mubr.f32.gmra.mrb[0].mxu0 %v333
        %v404 = vpop.f32.mrb[0].mxu0
        %v405 = vadd.f32 %v322, %v404
        %v406 = vpop.f32.mrb[0].mxu0
        %v407 = vadd.f32 %v324, %v406
        %408 = vmatprep.mubr.f32.mxu0 0.0
        %409 = vmatmul.mubr.f32.gmra.mrb[0].mxu0 %v336
        %v410 = vpop.f32.mrb[0].mxu0
        %v411 = vadd.f32 %v328, %v410
        %v412 = vpop.f32.mrb[0].mxu0
        %v413 = vadd.f32 %v330, %v412
        %414 = vdwg.mxu0
        %v415 = vld [vmem:[#allocation2 + $0x2] sm:$0xff]
        %v416 = vld [vmem:[#allocation2 + $0xa] sm:$0xff]
        %s417 = scalar_lea.vmem [#allocation6], 256
        %v418 = vld [vmem:[%s417] sm:$0xff]
        %v419 = vld [vmem:[%s417 + $0x8] sm:$0xff]
        %v420 = vld [vmem:[%s417 + $0x10] sm:$0xff]
        %v421 = vld [vmem:[%s417 + $0x18] sm:$0xff]
        %v422 = vld [vmem:[%s417 + $0x20] sm:$0xff]
        %v423 = vld [vmem:[%s417 + $0x28] sm:$0xff]
        %v424 = vld [vmem:[%s417 + $0x30] sm:$0xff]
        %v425 = vld [vmem:[%s417 + $0x38] sm:$0xff]
        %v426 = vld [vmem:[%s417 + $0x40] sm:$0xff]
        %v427 = vld [vmem:[%s417 + $0x48] sm:$0xff]
        %v428 = vld [vmem:[%s417 + $0x50] sm:$0xff]
        %v429 = vld [vmem:[%s417 + $0x58] sm:$0xff]
        %v430 = vld [vmem:[%s417 + $0x60] sm:$0xff]
        %v431 = vld [vmem:[%s417 + $0x68] sm:$0xff]
        %v432 = vld [vmem:[%s417 + $0x70] sm:$0xff]
        %v433 = vld [vmem:[%s417 + $0x78] sm:$0xff]
        %v435 = vsel %vm209, %v415, 0
        %v438 = vsel %vm209, %v416, 0
        %440 = vmatprep.subr.mxu0 %v419
        %441 = vmatpush1.msra.mxu0 %v418
        %442 = vmatprep.subr.mxu0 %v421
        %443 = vmatpush1.msra.mxu0 %v420
        %444 = vmatprep.subr.mxu0 %v423
        %445 = vmatpush1.msra.mxu0 %v422
        %446 = vmatprep.subr.mxu0 %v425
        %447 = vmatpush1.msra.mxu0 %v424
        %448 = vmatprep.subr.mxu0 %v427
        %449 = vmatpush1.msra.mxu0 %v426
        %450 = vmatprep.subr.mxu0 %v429
        %451 = vmatpush1.msra.mxu0 %v428
        %452 = vmatprep.subr.mxu0 %v431
        %453 = vmatpush1.msra.mxu0 %v430
        %454 = vmatprep.subr.mxu0 %v433
        %455 = vmatpush1.msra.mxu0 %v432
        %456 = vmatprep.subr.mxu0 0.0
        %457 = vmatpush1.msra.mxu0 0.0
        %458 = vmatprep.subr.mxu0 0.0
        %459 = vmatpush1.msra.mxu0 0.0
        %460 = vmatprep.subr.mxu0 0.0
        %461 = vmatpush1.msra.mxu0 0.0
        %462 = vmatprep.subr.mxu0 0.0
        %463 = vmatpush1.msra.mxu0 0.0
        %464 = vmatprep.subr.mxu0 0.0
        %465 = vmatpush1.msra.mxu0 0.0
        %466 = vmatprep.subr.mxu0 0.0
        %467 = vmatpush1.msra.mxu0 0.0
        %468 = vmatprep.subr.mxu0 0.0
        %469 = vmatpush1.msra.mxu0 0.0
        %470 = vmatprep.subr.mxu0 0.0
        %471 = vmatpush1.msra.mxu0 0.0
        %472 = vmatprep.subr.mxu0 0.0
        %473 = vmatpush1.msra.mxu0 0.0
        %474 = vmatprep.subr.mxu0 0.0
        %475 = vmatpush1.msra.mxu0 0.0
        %476 = vmatprep.subr.mxu0 0.0
        %477 = vmatpush1.msra.mxu0 0.0
        %478 = vmatprep.subr.mxu0 0.0
        %479 = vmatpush1.msra.mxu0 0.0
        %480 = vmatprep.subr.mxu0 0.0
        %481 = vmatpush1.msra.mxu0 0.0
        %482 = vmatprep.subr.mxu0 0.0
        %483 = vmatpush1.msra.mxu0 0.0
        %484 = vmatprep.subr.mxu0 0.0
        %485 = vmatpush1.msra.mxu0 0.0
        %486 = vmatprep.subr.mxu0 0.0
        %487 = vmatpush1.msra.mxu0 0.0
        %488 = vmatprep.subr.mxu0 0.0
        %489 = vmatpush1.msra.mxu0 0.0
        %490 = vmatprep.subr.mxu0 0.0
        %491 = vmatpush1.msra.mxu0 0.0
        %492 = vmatprep.subr.mxu0 0.0
        %493 = vmatpush1.msra.mxu0 0.0
        %494 = vmatprep.subr.mxu0 0.0
        %495 = vmatpush1.msra.mxu0 0.0
        %496 = vmatprep.subr.mxu0 0.0
        %497 = vmatpush1.msra.mxu0 0.0
        %498 = vmatprep.subr.mxu0 0.0
        %499 = vmatpush1.msra.mxu0 0.0
        %500 = vmatprep.subr.mxu0 0.0
        %501 = vmatpush1.msra.mxu0 0.0
        %502 = vmatprep.subr.mxu0 0.0
        %503 = vmatpush1.msra.mxu0 0.0
        %504 = vmatprep.mubr.f32.mxu0 0.0
        %505 = vmatmul.mubr.f32.gmra.mrb[0].mxu0 %v435
        %v506 = vpop.f32.mrb[0].mxu0
        %v507 = vadd.f32 0.0, %v506
        %v508 = vpop.f32.mrb[0].mxu0
        %v509 = vadd.f32 0.0, %v508
        %510 = vmatprep.mubr.f32.mxu0 0.0
        %511 = vmatmul.mubr.f32.gmra.mrb[0].mxu0 %v438
        %v512 = vpop.f32.mrb[0].mxu0
        %v513 = vadd.f32 0.0, %v512
        %v514 = vpop.f32.mrb[0].mxu0
        %v515 = vadd.f32 0.0, %v514
        %516 = vdwg.mxu0
        %v517 = vadd.f32 %v405, %v507
        %v518 = vadd.f32 %v407, %v509
        %v519 = vadd.f32 %v411, %v513
        %v520 = vadd.f32 %v413, %v515
        %v521 = vld [vmem:[%s2] sm:$0x3]
        %v523 = vlaneseq
        %v524 = vshrl.u32 %v523, 7
        %v525 = vsub.s32 0, %v524
        %v526 = vrot.slane %v521, %v525
        %v527 = vlaneseq
        %v528 = vshrl.u32 %v527, 7
        %v529 = vsub.s32 1, %v528
        %v530 = vrot.slane %v521, %v529
        %v533 = vadd.f32 %v517, %v526
        %v534 = vadd.f32 %v518, %v530
        %v535 = vadd.f32 %v519, %v526
        %v536 = vadd.f32 %v520, %v530
        %vm537 = vcmp.ge.f32.partialorder %v533, 0.0
        %vm538 = vcmp.ge.f32.partialorder %v535, 0.0
        %v539 = vmul.f32 %v533, 0.2
        %v540 = vmul.f32 %v535, 0.2
        %v541 = vsel %vm537, %v533, %v539
        %v542 = vsel %vm538, %v535, %v540
        %v543 = vsub.f32 0.0, %v534
        %v544 = vsub.f32 0.0, %v536
        %v545 = vmul.f32 %v543, 1.442695
        %v546 = vpow.pop %v545
        %v547 = vmul.f32 %v544, 1.442695
        %v548 = vpow.pop %v547
        %v549 = vadd.f32 %v546, 1.0
        %v550 = vadd.f32 %v548, 1.0
        %v551 = vrcp.pop %v549
        %v552 = vrcp.pop %v550
        %v553 = vmul.f32 %v541, %v551
        %v554 = vmul.f32 %v542, %v552
        %555 = vst [vmem:[%s203] sm:$0xff] %v553
        %556 = vst [vmem:[%s203 + $0x8] sm:$0xff] %v554
        %s557 = sand.u32 %s97, 1
        %s558 = scalar_lea.sflag [#allocation5], %s557
        %s559 = sand.u32 %s97, 1
        %s560 = smul.addr %s559, 16
        %s561 = scalar_lea.vmem [#allocation8], %s560
        // Predicated region
        $region41: #{tpu_custom_call.1} parent=31 // pred_check
          %p562 = pneg %p107
        $region42: #{tpu_custom_call.1} parent=31 // pred_check_branch
          %564 = sbr.rel (%p562) target = $region44
        $region43: #{tpu_custom_call.1} parent=31 // pred_region
          %s566 = ssub.s32 256, 256
          %567 = vsyncadd %s558, %s566
          %s568 = smul.addr %s21, 2
          %s569 = smul.addr %s568, 128
          %s570 = scalar_lea.hbm %s3, %s569
          %s571 = sshll.u32 %s561, 4
          %s572 = int_to_ptr.vmem [resolvable:$true] %s571
          %577 = dma.vmem_to_hbm [thread:$0]  %s572, 256, %s570, %s558, 128, 128, 8
        $region44: #{tpu_custom_call.1} parent=31 // pred_fallthru
          _
      $region32: #{tpu_custom_call.1} parent=5 // pred_fallthru
        _
      %p578 = scmp.le.s32.totalorder 2, %s16
      // Predicated region
      $region45: #{tpu_custom_call.1} parent=5 // pred_check
        %p579 = pneg %p578
      $region46: #{tpu_custom_call.1} parent=5 // pred_check_branch
        %581 = sbr.rel (%p579) target = $region48
      $region47: #{tpu_custom_call.1} parent=5 // pred_region
        %s582 = ssub.s32 %s16, 2
        // Predicated region
        $region49: #{tpu_custom_call.1} parent=47 // pred_check
          %p583 = pneg %p113
        $region50: #{tpu_custom_call.1} parent=47 // pred_check_branch
          %585 = sbr.rel (%p583) target = $region52
        $region51: #{tpu_custom_call.1} parent=47 // pred_region
          %s586 = sand.u32 %s98, 1
          %s587 = scalar_lea.sflag [#allocation5], %s586
          %s588 = sand.u32 %s98, 1
          %s589 = smul.addr %s588, 16
          %s590 = scalar_lea.vmem [#allocation8], %s589
          %591 = dma.done %s587, 256
        $region52: #{tpu_custom_call.1} parent=47 // pred_fallthru
          _
      $region48: #{tpu_custom_call.1} parent=5 // pred_fallthru
        _
    $region6: #{tpu_custom_call.1} parent=1 // loop_footer
      %s20 = sadd.s32 1, %s16
    $region7: #{tpu_custom_call.1} parent=1 // loop_footer_branch
      %15 = sbr.rel target = $region3
    $region8: #{tpu_custom_call.1} parent=1 // loop_exit
      _
    %592 = vsyncpa [#allocation4], 1
    %s593 = scalar_lea.sflag [#allocation4], 1
    %594 = vsyncpa %s593, 1
    %595 = vsyncpa [#allocation7], 1
    %596 = vsyncpa [#allocation5], 1
    %s597 = scalar_lea.sflag [#allocation5], 1
    %598 = vsyncpa %s597, 1

</llo_original>
